<compile_context>
chip_gen: v7x
topology: tpu7x:2x2x1
jax: 0.10.0
libtpu: 0.0.40
codegen_flags: <defaults>
</compile_context>

<pallas_src>
import functools
import math

import jax
import jax.numpy as jnp
from jax.experimental import pallas as pl
from jax.experimental.pallas import tpu as pltpu


def _tile_loss_partial(x_blk, y_blk, wt, *, alpha, gamma, rid_start, n_rows):
    """Focal loss for one (rows, D) sub-block, folded to an (8, D) partial sum."""
    x = x_blk.astype(jnp.float32)
    t = y_blk.astype(jnp.float32)

    # Numerically stable BCE-with-logits pieces with a SINGLE exp:
    #   e = exp(-|x|);  denom = 1 + e
    #   sigmoid(x)                          = where(x >= 0, 1, e) / denom
    #   log(exp(-max_val) + exp(-x-max_val)) = log(denom)
    e = jnp.exp(-jnp.abs(x))
    denom = 1.0 + e
    # Approx reciprocal (EUP) + one Newton step: cheaper than a full-precision
    # divide and ~f32-exact because denom is confined to [1, 2].
    r = pl.reciprocal(denom, approx=True)
    r = r * (2.0 - denom * r)
    p = jnp.where(x >= 0.0, 1.0, e) * r           # == sigmoid(x)
    log_term = jnp.log(denom)
    max_val = jnp.maximum(-x, 0.0)

    pt = p * t + (1.0 - p) * (1.0 - t)
    s = 1.0 - pt
    w = alpha * t + (1.0 - alpha) * (1.0 - t)
    if gamma == 2.0:
        w = w * (s * s)                            # VPU square, no exp/log
    elif gamma == 1.0:
        w = w * s
    elif gamma != 0.0:
        w = w * jnp.power(s, jnp.float32(gamma))
    w = w * wt

    loss = x - x * t + max_val + log_term
    loss = w * loss

    if rid_start is not None:
        # boundary sub-block only: zero rows whose global id >= n_rows
        rid = rid_start + jax.lax.broadcasted_iota(jnp.int32, loss.shape, 0)
        loss = jnp.where(rid < n_rows, loss, 0.0)

    rows, d = loss.shape
    # vreg-shaped partial sum: fold groups of 8 rows onto the (8, D) output
    # block (resident in VMEM across the inner "arbitrary" grid axis).
    return jnp.sum(loss.reshape(rows // 8, 8, d), axis=0)


def _focal_loss_kernel(x_ref, y_ref, w_ref, out_ref, *, alpha, gamma,
                       tile_n, inner_n, steps_per_chunk, n_rows, need_mask):
    c = pl.program_id(0)          # parallel chunk axis (megacore on 2-TC chips)
    i = pl.program_id(1)          # reduction axis: row tiles within a chunk

    @pl.when(i == 0)
    def _():
        out_ref[...] = jnp.zeros_like(out_ref)

    block = c * steps_per_chunk + i               # UNclamped logical block id
    row0 = block * tile_n
    wt = w_ref[...].astype(jnp.float32)           # (1, D), broadcast over rows
    inner_steps = tile_n // inner_n               # static

    def tile_partial(masked):
        # Inner loop over compute sub-blocks keeps live f32 intermediates
        # bounded (~inner_n*D each) while the DMA tile stays large.
        def body(j, acc):
            off = pl.multiple_of(j * inner_n, inner_n)
            part = _tile_loss_partial(
                x_ref[pl.ds(off, inner_n), :],
                y_ref[pl.ds(off, inner_n), :],
                wt, alpha=alpha, gamma=gamma,
                rid_start=(row0 + off) if masked else None,
                n_rows=n_rows)
            return acc + part
        return jax.lax.fori_loop(
            0, inner_steps, body, jnp.zeros(out_ref.shape, jnp.float32))

    if need_mask:
        interior = row0 + tile_n <= n_rows

        @pl.when(interior)
        def _():
            out_ref[...] += tile_partial(masked=False)

        # Partial boundary tile: pay the iota/compare/select only here.
        @pl.when(jnp.logical_not(interior) & (row0 < n_rows))
        def _():
            out_ref[...] += tile_partial(masked=True)
        # Fully out-of-range padded steps (odd block count split across
        # chunks) skip compute entirely; their clamped DMA re-reads valid data.
    else:
        out_ref[...] += tile_partial(masked=False)


def _default_num_chunks():
    """Number of TensorCores behind one device (megacore chips get 2)."""
    try:
        kind = jax.devices()[0].device_kind.lower()
    except Exception:
        return 1
    if ("lite" in kind or "v5e" in kind or "v6" in kind
            or "v2" in kind or "v3" in kind):
        return 1
    if "v4" in kind or "v5p" in kind or "v7" in kind:
        return 2
    return 1


def focal_loss(x, y, weight, *, alpha=0.5, gamma=2.0,
               tile_n=None, num_chunks=None,
               target_tile_bytes=8 * 1024 * 1024):
    """Focal loss over logits x and targets y, both [N, D]; weight is [D].

    Matches MyFocalLoss.forward (mean over all N*D elements).  Inputs may be
    f32, bf16 or int8 — the kernel upcasts to f32 internally; callers can pass
    narrower x / y to cut HBM traffic on this memory-bound op.
    """
    N, D = x.shape
    assert y.shape == (N, D), (x.shape, y.shape)
    w2d = jnp.asarray(weight).reshape(1, D).astype(jnp.float32)

    x_item = jnp.dtype(x.dtype).itemsize
    y_item = jnp.dtype(y.dtype).itemsize
    # sublane granule of the packed input dtypes (f32: 8, bf16: 16, int8: 32)
    sub = max(8, 32 // min(x_item, 4), 32 // min(y_item, 4))
    inner_target = 1024                     # compute sub-block rows

    # ---- DMA tile sizing: big tiles amortize the ~0.35 us/step overhead ----
    if tile_n is None:
        rows = max(sub, target_tile_bytes // (D * max(x_item, y_item)))
        if rows >= inner_target:
            rows -= rows % inner_target
        else:
            rows -= rows % sub
        n_ceil = pl.cdiv(N, sub) * sub
        tile_n = int(max(sub, min(rows, n_ceil)))
    tile_n = int(tile_n)
    if tile_n % sub:
        raise ValueError(f"tile_n={tile_n} must be a multiple of {sub} for "
                         f"input dtypes {x.dtype}/{y.dtype}")
    inner_n = math.gcd(tile_n, inner_target)   # divides tile_n, >= sub

    total_blocks = pl.cdiv(N, tile_n)
    if num_chunks is None:
        num_chunks = _default_num_chunks()
    num_chunks = int(max(1, min(num_chunks, total_blocks)))
    steps_per_chunk = pl.cdiv(total_blocks, num_chunks)
    grid_blocks = num_chunks * steps_per_chunk
    need_mask = grid_blocks * tile_n != N       # any padded / partial step?
    last_block = total_blocks - 1

    # No wrapper-side jnp.pad: trailing steps clamp their block index (re-read
    # valid data); the in-kernel mask / skip keeps the sum exact.
    def in_idx(c, i):
        return (jnp.minimum(c * steps_per_chunk + i, last_block), 0)

    kernel = functools.partial(
        _focal_loss_kernel,
        alpha=float(alpha), gamma=float(gamma),
        tile_n=tile_n, inner_n=inner_n,
        steps_per_chunk=steps_per_chunk, n_rows=N, need_mask=need_mask)

    # VMEM: double-buffered input tiles + ~16 live (inner_n, D) f32 temps.
    vmem_est = (2 * tile_n * D * (x_item + y_item)
                + 16 * inner_n * D * 4
                + num_chunks * 8 * D * 4 + (1 << 20))
    vmem_limit = int(min(60 * 1024 * 1024, max(16 * 1024 * 1024, vmem_est)))

    cost = pl.CostEstimate(
        flops=int(30 * N * D),
        transcendentals=int(2 * N * D),
        bytes_accessed=int(N * D * (x_item + y_item) + D * 4
                           + num_chunks * 8 * D * 4))

    partials = pl.pallas_call(
        kernel,
        out_shape=jax.ShapeDtypeStruct((num_chunks * 8, D), jnp.float32),
        grid_spec=pltpu.PrefetchScalarGridSpec(
            num_scalar_prefetch=0,
            grid=(num_chunks, steps_per_chunk),
            in_specs=[
                pl.BlockSpec((tile_n, D), in_idx),
                pl.BlockSpec((tile_n, D), in_idx),
                pl.BlockSpec((1, D), lambda c, i: (0, 0)),
            ],
            out_specs=pl.BlockSpec((8, D), lambda c, i: (c, 0)),
        ),
        compiler_params=pltpu.CompilerParams(
            dimension_semantics=("parallel", "arbitrary"),
            vmem_limit_bytes=vmem_limit,
        ),
        cost_estimate=cost,
    )(x, y, w2d)

    # Final cross-lane/sublane reduce + mean outside the kernel (tiny).
    return jnp.sum(partials) / jnp.float32(N * D)


def _focal_loss_ref(x, y, weight, alpha=0.5, gamma=2.0):
    # Pure-JAX reference mirroring the PyTorch forward.
    x = x.astype(jnp.float32)
    t = y.astype(jnp.float32)
    p = jax.nn.sigmoid(x)
    pt = p * t + (1 - p) * (1 - t)
    w = alpha * t + (1 - alpha) * (1 - t)
    w = w * jnp.power(1 - pt, gamma)
    w = w * weight.reshape(1, -1)
    max_val = jnp.maximum(-x, 0.0)
    loss = x - x * t + max_val + jnp.log(jnp.exp(-max_val) + jnp.exp(-x - max_val))
    return jnp.mean(w * loss)


if __name__ == "__main__":
    key = jax.random.PRNGKey(0)

    def make(n, d, k, dtype=jnp.float32):
        kx, ky = jax.random.split(k)
        x = jax.random.normal(kx, (n, d), dtype=jnp.float32).astype(dtype)
        y = (jax.random.uniform(ky, (n, d)) > 0.5).astype(dtype)
        w = jnp.linspace(0.5, 1.5, d, dtype=jnp.float32)
        return x, y, w

    def check(out, x, y, w):
        ref = _focal_loss_ref(x.astype(jnp.float32), y.astype(jnp.float32), w)
        assert jnp.allclose(out, ref, rtol=5e-5, atol=1e-6), (out, ref)

    ks = jax.random.split(key, 5)

    # 1) small [N, D] shape matching the module layout
    x, y, w = make(16, 128, ks[0])
    check(jax.block_until_ready(focal_loss(x, y, w)), x, y, w)

    # 2) N not a multiple of 8 -> boundary-tile masking, no wrapper-side pad
    x, y, w = make(20, 128, ks[1])
    check(jax.block_until_ready(focal_loss(x, y, w)), x, y, w)

    # 3) multi-step grid, 2 parallel chunks, wider class dim
    x, y, w = make(64, 256, ks[2])
    check(jax.block_until_ready(focal_loss(x, y, w, tile_n=8, num_chunks=2)),
          x, y, w)

    # 4) odd block count + partial last block with 2 chunks: one grid step is
    #    fully out-of-range and must be skipped (clamped block index).
    x, y, w = make(70, 128, ks[3])
    check(jax.block_until_ready(focal_loss(x, y, w, tile_n=8, num_chunks=2)),
          x, y, w)

    # 5) narrow (bf16) inputs: y is 0/1 so the cast is exact; reference is
    #    computed on the same bf16-rounded values upcast to f32.
    x, y, w = make(40, 128, ks[4], dtype=jnp.bfloat16)
    check(jax.block_until_ready(focal_loss(x, y, w)), x, y, w)

    print("KERNEL_OK")
</pallas_src>

<mosaic_0001>
module attributes {stable_mosaic.version = 11 : i64} {
  func.func @_focal_loss_kernel(%arg0: i32, %arg1: i32, %arg2: memref<16x128xf32, #tpu.memory_space<vmem>>, %arg3: memref<16x128xf32, #tpu.memory_space<vmem>>, %arg4: memref<1x128xf32, #tpu.memory_space<vmem>>, %arg5: memref<8x128xf32, #tpu.memory_space<vmem>>) attributes {dimension_semantics = [#tpu.dimension_semantics<parallel>, #tpu.dimension_semantics<arbitrary>], iteration_bounds = array<i64: 1, 1>, scalar_prefetch = 0 : i64, scratch_operands = 0 : i64, tpu.core_type = #tpu.core_type<tc>, window_params = [{transform_indices = @transform_0, window_bounds = array<i64: 16, 128>}, {transform_indices = @transform_1, window_bounds = array<i64: 16, 128>}, {pipeline_mode = #tpu.pipeline_mode<synchronous>, transform_indices = @transform_2, window_bounds = array<i64: 1, 128>}, {transform_indices = @transform_3, window_bounds = array<i64: 8, 128>}]} {
    %c0_i32 = arith.constant 0 : i32
    %0 = arith.cmpi eq, %arg1, %c0_i32 : i32
    %1 = arith.extui %0 : i1 to i32
    %c0_i32_0 = arith.constant 0 : i32
    %2 = arith.cmpi ne, %1, %c0_i32_0 : i32
    scf.if %2 {
      %cst_23 = arith.constant 0.000000e+00 : f32
      %63 = vector.broadcast %cst_23 : f32 to vector<8x128xf32>
      %c0_24 = arith.constant 0 : index
      %c0_25 = arith.constant 0 : index
      %64 = vector.load %arg5[%c0_24, %c0_25] : memref<8x128xf32, #tpu.memory_space<vmem>>, vector<8x128xf32>
      tpu.vector_store %arg5[%c0_24, %c0_25], %63 {strides = array<i32>} : memref<8x128xf32, #tpu.memory_space<vmem>>, vector<8x128xf32>,
    } else {
    }
    %c0 = arith.constant 0 : index
    %c0_1 = arith.constant 0 : index
    %3 = vector.load %arg4[%c0, %c0_1] : memref<1x128xf32, #tpu.memory_space<vmem>>, vector<1x128xf32>
    %c0_2 = arith.constant 0 : index
    %c0_3 = arith.constant 0 : index
    %4 = vector.load %arg5[%c0_2, %c0_3] : memref<8x128xf32, #tpu.memory_space<vmem>>, vector<8x128xf32>
    %cst = arith.constant 0.000000e+00 : f32
    %5 = vector.broadcast %cst : f32 to vector<8x128xf32>
    %c0_i32_4 = arith.constant 0 : i32
    %c16_i32 = arith.constant 16 : i32
    %6 = arith.muli %c0_i32_4, %c16_i32 : i32
    %7 = tpu.assume_multiple %6, 16 : i32
    %8 = arith.index_cast %7 : i32 to index
    %c0_5 = arith.constant 0 : index
    %9 = vector.load %arg2[%8, %c0_5] : memref<16x128xf32, #tpu.memory_space<vmem>>, vector<16x128xf32>
    %10 = arith.index_cast %7 : i32 to index
    %c0_6 = arith.constant 0 : index
    %11 = vector.load %arg3[%10, %c0_6] : memref<16x128xf32, #tpu.memory_space<vmem>>, vector<16x128xf32>
    %12 = math.absf %9 : vector<16x128xf32>
    %cst_7 = arith.constant 0.000000e+00 : f32
    %13 = vector.broadcast %cst_7 : f32 to vector<16x128xf32>
    %14 = arith.subf %13, %12 : vector<16x128xf32>
    %15 = math.exp %14 : vector<16x128xf32>
    %cst_8 = arith.constant 1.000000e+00 : f32
    %16 = vector.broadcast %cst_8 : f32 to vector<16x128xf32>
    %17 = arith.addf %16, %15 : vector<16x128xf32>
    %18 = tpu.reciprocal %17 {approx = true} : vector<16x128xf32> -> vector<16x128xf32>
    %19 = arith.mulf %17, %18 : vector<16x128xf32>
    %cst_9 = arith.constant 2.000000e+00 : f32
    %20 = vector.broadcast %cst_9 : f32 to vector<16x128xf32>
    %21 = arith.subf %20, %19 : vector<16x128xf32>
    %22 = arith.mulf %18, %21 : vector<16x128xf32>
    %cst_10 = arith.constant 0.000000e+00 : f32
    %23 = vector.broadcast %cst_10 : f32 to vector<16x128xf32>
    %24 = arith.cmpf oge, %9, %23 : vector<16x128xf32>
    %cst_11 = arith.constant 1.000000e+00 : f32
    %25 = vector.broadcast %cst_11 : f32 to vector<16x128xf32>
    %26 = arith.select %24, %25, %15 : vector<16x128xi1>, vector<16x128xf32>
    %27 = arith.mulf %26, %22 : vector<16x128xf32>
    %28 = math.log %17 : vector<16x128xf32>
    %cst_12 = arith.constant 0.000000e+00 : f32
    %29 = vector.broadcast %cst_12 : f32 to vector<16x128xf32>
    %30 = arith.subf %29, %9 : vector<16x128xf32>
    %cst_13 = arith.constant 0.000000e+00 : f32
    %31 = vector.broadcast %cst_13 : f32 to vector<16x128xf32>
    %32 = arith.maximumf %30, %31 : vector<16x128xf32>
    %33 = arith.mulf %27, %11 : vector<16x128xf32>
    %cst_14 = arith.constant 1.000000e+00 : f32
    %34 = vector.broadcast %cst_14 : f32 to vector<16x128xf32>
    %35 = arith.subf %34, %27 : vector<16x128xf32>
    %cst_15 = arith.constant 1.000000e+00 : f32
    %36 = vector.broadcast %cst_15 : f32 to vector<16x128xf32>
    %37 = arith.subf %36, %11 : vector<16x128xf32>
    %38 = arith.mulf %35, %37 : vector<16x128xf32>
    %39 = arith.addf %33, %38 : vector<16x128xf32>
    %cst_16 = arith.constant 1.000000e+00 : f32
    %40 = vector.broadcast %cst_16 : f32 to vector<16x128xf32>
    %41 = arith.subf %40, %39 : vector<16x128xf32>
    %cst_17 = arith.constant 5.000000e-01 : f32
    %42 = vector.broadcast %cst_17 : f32 to vector<16x128xf32>
    %43 = arith.mulf %42, %11 : vector<16x128xf32>
    %cst_18 = arith.constant 1.000000e+00 : f32
    %44 = vector.broadcast %cst_18 : f32 to vector<16x128xf32>
    %45 = arith.subf %44, %11 : vector<16x128xf32>
    %cst_19 = arith.constant 5.000000e-01 : f32
    %46 = vector.broadcast %cst_19 : f32 to vector<16x128xf32>
    %47 = arith.mulf %46, %45 : vector<16x128xf32>
    %48 = arith.addf %43, %47 : vector<16x128xf32>
    %49 = arith.mulf %41, %41 : vector<16x128xf32>
    %50 = arith.mulf %48, %49 : vector<16x128xf32>
    %51 = vector.broadcast %3 : vector<1x128xf32> to vector<16x128xf32>
    %52 = arith.mulf %50, %51 : vector<16x128xf32>
    %53 = arith.mulf %9, %11 : vector<16x128xf32>
    %54 = arith.subf %9, %53 : vector<16x128xf32>
    %55 = arith.addf %54, %32 : vector<16x128xf32>
    %56 = arith.addf %55, %28 : vector<16x128xf32>
    %57 = arith.mulf %52, %56 : vector<16x128xf32>
    %58 = vector.shape_cast %57 : vector<16x128xf32> to vector<2x8x128xf32>
    %cst_20 = arith.constant dense<0.000000e+00> : vector<8x128xf32>
    %59 = vector.multi_reduction <add>, %58, %cst_20 [0] : vector<2x8x128xf32> to vector<8x128xf32>
    %60 = arith.addf %5, %59 : vector<8x128xf32>
    %c1_i32 = arith.constant 1 : i32
    %61 = arith.addf %4, %60 : vector<8x128xf32>
    %c0_21 = arith.constant 0 : index
    %c0_22 = arith.constant 0 : index
    %62 = vector.load %arg5[%c0_21, %c0_22] : memref<8x128xf32, #tpu.memory_space<vmem>>, vector<8x128xf32>
    tpu.vector_store %arg5[%c0_21, %c0_22], %61 {strides = array<i32>} : memref<8x128xf32, #tpu.memory_space<vmem>>, vector<8x128xf32>,
    return
  }
  func.func @transform_0(%arg0: i32, %arg1: i32) -> (i32, i32) {
    %c1_i32 = arith.constant 1 : i32
    %0 = arith.muli %arg0, %c1_i32 : i32
    %1 = arith.addi %0, %arg1 : i32
    %c0_i32 = arith.constant 0 : i32
    %2 = arith.minsi %1, %c0_i32 : i32
    %c0_i32_0 = arith.constant 0 : i32
    %c0_i32_1 = arith.constant 0 : i32
    return %2, %c0_i32_0 : i32, i32
  }
  func.func @transform_1(%arg0: i32, %arg1: i32) -> (i32, i32) {
    %c1_i32 = arith.constant 1 : i32
    %0 = arith.muli %arg0, %c1_i32 : i32
    %1 = arith.addi %0, %arg1 : i32
    %c0_i32 = arith.constant 0 : i32
    %2 = arith.minsi %1, %c0_i32 : i32
    %c0_i32_0 = arith.constant 0 : i32
    %c0_i32_1 = arith.constant 0 : i32
    return %2, %c0_i32_0 : i32, i32
  }
  func.func @transform_2(%arg0: i32, %arg1: i32) -> (i32, i32) {
    %c0_i32 = arith.constant 0 : i32
    %c0_i32_0 = arith.constant 0 : i32
    %c0_i32_1 = arith.constant 0 : i32
    return %c0_i32, %c0_i32_0 : i32, i32
  }
  func.func @transform_3(%arg0: i32, %arg1: i32) -> (i32, i32) {
    %c0_i32 = arith.constant 0 : i32
    %c0_i32_0 = arith.constant 0 : i32
    return %arg0, %c0_i32 : i32, i32
  }
}

</mosaic_0001>

<llo_original>
// kernel: tpu_custom_call.1
$region0: #{tpu_custom_call.1}
  #allocation0 [shape = 'u32[]', space=smem, size = 0x4, offset = 0x4, fixed_abs, tag = 'smem constant byte address 0x4 - core index']
  #allocation1 [shape = 'u32[144,128]{1,0:T(1,128)}', space=vmem, size = 0x12000, scoped, tag = 'internal scratch']
  %s0 = inlined_call_operand.hbm [shape: f32[16,128], index: 0, kind: input, shape index: {}]
  %s1 = inlined_call_operand.hbm [shape: f32[16,128], index: 1, kind: input, shape index: {}]
  %s2 = inlined_call_operand.vmem [shape: f32[1,128], index: 2, kind: input, shape index: {}]
  %s3 = inlined_call_operand.hbm [shape: f32[8,128], index: 3, kind: output, shape index: {}]
  %s4 = sld [smem:[#allocation0]]
  $region34: #{tpu_custom_call.1} parent=0
    _
  %s6 = ssub.s32 1, %s4
  %s7 = scalar_select 0, %s6, %s4
  $region1: #{tpu_custom_call.1} parent=0
    #allocation2 [shape = 'u8[8192]{0}', space=vmem, size = 0x2000, scoped, tag = 'input window, operand 0, single buffered']
    #allocation3 [shape = 's32[1]{0}', space=sflag, size = 0x4, scoped, tag = 'scoped memory for tpu_custom_call.1']
    #allocation4 [shape = 's32[1]{0}', space=sflag, size = 0x4, scoped, tag = 'scoped memory for tpu_custom_call.1']
    #allocation5 [shape = 'u8[8192]{0}', space=vmem, size = 0x2000, scoped, tag = 'input window, operand 1, single buffered']
    #allocation6 [shape = 's32[1]{0}', space=sflag, size = 0x4, scoped, tag = 'scoped memory for tpu_custom_call.1']
    #allocation7 [shape = 'u8[4096]{0}', space=vmem, size = 0x1000, scoped, tag = 'output window, operand 0, single buffered']
    %8 = vsyncpa [#allocation3], 0
    %9 = vsyncpa [#allocation6], 0
    %10 = vsyncpa [#allocation4], 0
    // Predicated region
    $region2: #{tpu_custom_call.1} parent=1 // pred_check
      _
    $region3: #{tpu_custom_call.1} parent=1 // pred_check_branch
      %12 = sbr.rel (0) target = $region5
    $region4: #{tpu_custom_call.1} parent=1 // pred_region
      %s13 = sadd.s32 0, 0
      %p14 = scmp.lt.s32.totalorder %s13, 0
      %s15 = scalar_select %p14, %s13, 0
      %s16 = smul.u32 2, %s15
      %s18 = ssub.s32 256, 256
      %19 = vsyncadd [#allocation3], %s18
      %s20 = smul.addr %s16, 128
      %s21 = scalar_lea.hbm %s0, %s20
      %s22 = sshll.u32 [#allocation2], 4
      %s23 = int_to_ptr.vmem [resolvable:$true] %s22
      %28 = dma.hbm_to_vmem [thread:$0]  %s21, 256, %s23, [#allocation3], 128, 128, 8
    $region5: #{tpu_custom_call.1} parent=1 // pred_fallthru
      _
    // Predicated region
    $region6: #{tpu_custom_call.1} parent=1 // pred_check
      _
    $region7: #{tpu_custom_call.1} parent=1 // pred_check_branch
      %30 = sbr.rel (0) target = $region9
    $region8: #{tpu_custom_call.1} parent=1 // pred_region
      %s31 = sadd.s32 0, 0
      %p32 = scmp.lt.s32.totalorder %s31, 0
      %s33 = scalar_select %p32, %s31, 0
      %s34 = smul.u32 2, %s33
      %s36 = ssub.s32 256, 256
      %37 = vsyncadd [#allocation6], %s36
      %s38 = smul.addr %s34, 128
      %s39 = scalar_lea.hbm %s1, %s38
      %s40 = sshll.u32 [#allocation5], 4
      %s41 = int_to_ptr.vmem [resolvable:$true] %s40
      %46 = dma.hbm_to_vmem [thread:$0]  %s39, 256, %s41, [#allocation6], 128, 128, 8
    $region9: #{tpu_custom_call.1} parent=1 // pred_fallthru
      _
    // Predicated region
    $region10: #{tpu_custom_call.1} parent=1 // pred_check
      _
    $region11: #{tpu_custom_call.1} parent=1 // pred_check_branch
      %48 = sbr.rel (0) target = $region13
    $region12: #{tpu_custom_call.1} parent=1 // pred_region
      _
    $region13: #{tpu_custom_call.1} parent=1 // pred_fallthru
      _
    // Predicated region
    $region14: #{tpu_custom_call.1} parent=1 // pred_check
      _
    $region15: #{tpu_custom_call.1} parent=1 // pred_check_branch
      %50 = sbr.rel (0) target = $region17
    $region16: #{tpu_custom_call.1} parent=1 // pred_region
      %51 = dma.done [#allocation3], 256
    $region17: #{tpu_custom_call.1} parent=1 // pred_fallthru
      _
    // Predicated region
    $region18: #{tpu_custom_call.1} parent=1 // pred_check
      _
    $region19: #{tpu_custom_call.1} parent=1 // pred_check_branch
      %53 = sbr.rel (0) target = $region21
    $region20: #{tpu_custom_call.1} parent=1 // pred_region
      %54 = dma.done [#allocation6], 256
    $region21: #{tpu_custom_call.1} parent=1 // pred_fallthru
      _
    %s55 = sadd.s32 0, 0
    %p56 = scmp.lt.s32.totalorder %s55, 0
    %s57 = scalar_select %p56, %s55, 0
    %s58 = smul.u32 2, %s57
    %s59 = sadd.s32 0, 0
    %p60 = scmp.lt.s32.totalorder %s59, 0
    %s61 = scalar_select %p60, %s59, 0
    %s62 = smul.u32 2, %s61
    %p63 = scmp.eq.s32.totalorder 0, 0
    // Predicated region
    $region22: #{tpu_custom_call.1} parent=1 // pred_check
      %p64 = pneg %p63
    $region23: #{tpu_custom_call.1} parent=1 // pred_check_branch
      %66 = sbr.rel (%p64) target = $region25
    $region24: #{tpu_custom_call.1} parent=1 // pred_region
      %67 = vst [vmem:[#allocation7] sm:$0xff] 0.0
    $region25: #{tpu_custom_call.1} parent=1 // pred_fallthru
      _
    %v68 = vld [vmem:[%s2] sm:$0x1]
    %v69 = vld [vmem:[#allocation7] sm:$0xff]
    %v70 = vld [vmem:[#allocation2] sm:$0xff]
    %v71 = vld [vmem:[#allocation2 + $0x8] sm:$0xff]
    %v72 = vld [vmem:[#allocation5] sm:$0xff]
    %v73 = vld [vmem:[#allocation5 + $0x8] sm:$0xff]
    %v74 = vand.u32 2147483647, %v70
    %v75 = vand.u32 2147483647, %v71
    %v76 = vsub.f32 0.0, %v74
    %v77 = vsub.f32 0.0, %v75
    %v78 = vmul.f32 %v76, 1.442695
    %v79 = vpow.pop %v78
    %v80 = vmul.f32 %v77, 1.442695
    %v81 = vpow.pop %v80
    %v82 = vadd.f32 %v79, 1.0
    %v83 = vadd.f32 %v81, 1.0
    %v84 = vrcp.pop %v82
    %v85 = vrcp.pop %v83
    %v86 = vmul.f32 %v82, %v84
    %v87 = vmul.f32 %v83, %v85
    %v88 = vsub.f32 2.0, %v86
    %v89 = vsub.f32 2.0, %v87
    %v90 = vmul.f32 %v84, %v88
    %v91 = vmul.f32 %v85, %v89
    %vm92 = vcmp.ge.f32.partialorder %v70, 0.0
    %vm93 = vcmp.ge.f32.partialorder %v71, 0.0
    %v94 = vsel %vm92, 1.0, %v79
    %v95 = vsel %vm93, 1.0, %v81
    %v96 = vmul.f32 %v94, %v90
    %v97 = vmul.f32 %v95, %v91
    %v98 = vlog2.pop %v82
    %v99 = vmul.f32 %v98, 0.6931472
    %v100 = vlog2.pop %v83
    %v101 = vmul.f32 %v100, 0.6931472
    %v102 = vsub.f32 0.0, %v70
    %v103 = vsub.f32 0.0, %v71
    %v104 = vmax.f32 %v102, 0.0
    %v105 = vmax.f32 %v103, 0.0
    %v106 = vmul.f32 %v96, %v72
    %v107 = vmul.f32 %v97, %v73
    %v108 = vsub.f32 1.0, %v96
    %v109 = vsub.f32 1.0, %v97
    %v110 = vsub.f32 1.0, %v72
    %v111 = vsub.f32 1.0, %v73
    %v112 = vmul.f32 %v108, %v110
    %v113 = vmul.f32 %v109, %v111
    %v114 = vadd.f32 %v106, %v112
    %v115 = vadd.f32 %v107, %v113
    %v116 = vsub.f32 1.0, %v114
    %v117 = vsub.f32 1.0, %v115
    %v118 = vmul.f32 %v72, 0.5
    %v119 = vmul.f32 %v73, 0.5
    %v120 = vmul.f32 %v110, 0.5
    %v121 = vmul.f32 %v111, 0.5
    %v122 = vadd.f32 %v118, %v120
    %v123 = vadd.f32 %v119, %v121
    %v124 = vmul.f32 %v116, %v116
    %v125 = vmul.f32 %v117, %v117
    %v126 = vmul.f32 %v122, %v124
    %v127 = vmul.f32 %v123, %v125
    %v129 = vlaneseq
    %v130 = vshrl.u32 %v129, 7
    %v131 = vsub.s32 0, %v130
    %v132 = vrot.slane %v68, %v131
    %v134 = vmul.f32 %v126, %v132
    %v135 = vmul.f32 %v127, %v132
    %v136 = vmul.f32 %v70, %v72
    %v137 = vmul.f32 %v71, %v73
    %v138 = vsub.f32 %v70, %v136
    %v139 = vsub.f32 %v71, %v137
    %v140 = vadd.f32 %v138, %v104
    %v141 = vadd.f32 %v139, %v105
    %v142 = vadd.f32 %v140, %v99
    %v143 = vadd.f32 %v141, %v101
    %v144 = vmul.f32 %v134, %v142
    %v145 = vmul.f32 %v135, %v143
    %v146 = vadd.f32 %v144, %v145
    %v147 = vadd.f32 %v146, 0.0
    %v148 = vadd.f32 %v69, %v147
    %149 = vst [vmem:[#allocation7] sm:$0xff] %v148
    // Predicated region
    $region26: #{tpu_custom_call.1} parent=1 // pred_check
      _
    $region27: #{tpu_custom_call.1} parent=1 // pred_check_branch
      %151 = sbr.rel (0) target = $region29
    $region28: #{tpu_custom_call.1} parent=1 // pred_region
      %s153 = ssub.s32 128, 128
      %154 = vsyncadd [#allocation4], %s153
      %s156 = sshll.u32 [#allocation7], 4
      %s157 = int_to_ptr.vmem [resolvable:$true] %s156
      %159 = dma.vmem_to_hbm [thread:$0]  %s157, 128, %s3, [#allocation4]
    $region29: #{tpu_custom_call.1} parent=1 // pred_fallthru
      _
    // Predicated region
    $region30: #{tpu_custom_call.1} parent=1 // pred_check
      _
    $region31: #{tpu_custom_call.1} parent=1 // pred_check_branch
      %161 = sbr.rel (0) target = $region33
    $region32: #{tpu_custom_call.1} parent=1 // pred_region
      %162 = dma.done [#allocation4], 128
    $region33: #{tpu_custom_call.1} parent=1 // pred_fallthru
      _
    %163 = vsyncpa [#allocation3], 1
    %164 = vsyncpa [#allocation6], 1
    %165 = vsyncpa [#allocation4], 1

</llo_original>
